<compile_context>
chip_gen: v5e
topology: v5e:2x2
jax: 0.10.0
libtpu: 0.0.40
codegen_flags: <defaults>
</compile_context>

<pallas_src>
import jax
import jax.numpy as jnp
from jax.experimental import pallas as pl
from jax.experimental.pallas import tpu as pltpu


def _upsample_concat_kernel(x_ref, skip_ref, dup_w_ref, o_ref):
    """Fused nearest-neighbor 2x upsample of `x` + channel concat with `skip`.

    Per grid step (batch dim squeezed away by the BlockSpec):
      x_ref:     (C1, TH, W)        input row-band
      skip_ref:  (C2, TH, 4W)       skip row-band, row-pair flattened view
      dup_w_ref: (W, 2W)            0/1 column duplicator  D[w, u] = (w == u // 2)
      o_ref:     (C1 + C2, TH, 4W)  output row-band, row-pair flattened view

    Row-pair flattened view: output row t of length 4W corresponds to the two
    consecutive full-resolution rows 2t and 2t+1 laid out back to back, so
    nearest height duplication == writing the same 2W-wide row to both halves.
    """
    c1, th, w = x_ref.shape
    two_w = dup_w_ref.shape[1]

    x = x_ref[...]
    if x.dtype != dup_w_ref.dtype:
        # Non-MXU dtypes (e.g. integers) go through f32; 0/1 matmul is exact.
        x = x.astype(dup_w_ref.dtype)

    # Width duplication as ONE collapsed 2D matmul on the MXU.
    # (C1, TH, W) -> (C1*TH, W) is a free slab/sublane merge when TH % 8 == 0.
    x2 = x.reshape(c1 * th, w)
    y = jnp.dot(x2, dup_w_ref[...], preferred_element_type=dup_w_ref.dtype)
    y = y.reshape(c1, th, two_w).astype(o_ref.dtype)          # (C1, TH, 2W)

    # Height duplication: write the same width-duplicated row into both lane
    # halves (rows 2t and 2t+1 of the full-resolution output).
    o_ref[:c1, :, :two_w] = y
    o_ref[:c1, :, two_w:] = y

    # Fused channel concat: the skip half is a straight copy in the same view.
    o_ref[c1:, :, :] = skip_ref[...].astype(o_ref.dtype)


def _physical_vmem_bytes():
    """Best-effort physical VMEM per TensorCore; conservative fallback (v7x)."""
    try:
        info = pltpu.get_tpu_info()
        cap = getattr(info, "vmem_capacity_bytes", None)
        if cap:
            return int(cap)
    except Exception:
        pass
    return 64 * 1024 * 1024


def upsample_forward(inputs, down_outputs, *, row_block=None,
                     vmem_limit_bytes=None):
    """Pallas TPU equivalent of UpSample.forward (NCHW, like PyTorch).

    inputs:       (N, C1, H, W)
    down_outputs: (N, C2, 2H, 2W)
    returns:      (N, C1 + C2, 2H, 2W)
    """
    N, C1, H, W = inputs.shape
    Ns, C2, Hs, Ws = down_outputs.shape
    if Ns != N or Hs != 2 * H or Ws != 2 * W:
        raise ValueError(
            f"down_outputs shape {down_outputs.shape} incompatible with "
            f"inputs shape {inputs.shape} (expected (N, C2, 2H, 2W))")

    # torch.cat dtype promotion; NO wrapper-side cast of the skip tensor
    # (the in-kernel .astype handles it without an extra HBM pass).
    out_dtype = jnp.promote_types(inputs.dtype, down_outputs.dtype)
    mm_dtype = inputs.dtype if jnp.issubdtype(inputs.dtype, jnp.floating) \
        else jnp.float32

    in_item = jnp.dtype(inputs.dtype).itemsize
    skip_item = jnp.dtype(down_outputs.dtype).itemsize
    out_item = jnp.dtype(out_dtype).itemsize
    mm_item = jnp.dtype(mm_dtype).itemsize

    def modeled_bytes(th):
        # Every pipelined BlockSpec operand is double-buffered; add matmul
        # intermediates (result + cast copy) on top.
        x_blk = C1 * th * W * in_item
        skip_blk = C2 * th * 4 * W * skip_item
        out_blk = (C1 + C2) * th * 4 * W * out_item
        dupw_blk = W * 2 * W * mm_item
        inter = 2 * C1 * th * 2 * W * max(mm_item, out_item)
        return 2 * (x_blk + skip_blk + out_blk + dupw_blk) + inter

    phys = _physical_vmem_bytes()
    default_limit = min(phys * 3 // 4, 100 * 1024 * 1024)      # ~48 MiB v7x, ~96 MiB v5e/v6e
    budget = min(default_limit * 3 // 5, 40 * 1024 * 1024)     # per-call working-set target

    if row_block is not None:
        TH = int(row_block)
    else:
        cands = sorted({d for d in range(8, H + 1, 8) if H % d == 0} | {H})
        fitting = [t for t in cands if modeled_bytes(t) <= budget]
        if fitting:
            # Prefer >= 2 row bands so the v7x megacore has steps to shard.
            multi = [t for t in fitting if H // t >= 2]
            TH = max(multi) if multi else max(fitting)
        else:
            TH = min(cands)
    if H % TH != 0:
        raise ValueError(f"row_block {TH} must divide H={H}")
    n_row_blocks = H // TH

    need = modeled_bytes(TH) + 8 * 1024 * 1024                 # headroom
    if vmem_limit_bytes is None:
        vmem_limit_bytes = max(default_limit, min(need, phys * 9 // 10))
    vmem_limit_bytes = int(vmem_limit_bytes)

    # Constant 0/1 width-duplication matrix (tiny; DMA'd once via constant map).
    ww = jnp.arange(W, dtype=jnp.int32)[:, None]
    uu = jnp.arange(2 * W, dtype=jnp.int32)[None, :]
    dup_w = (ww == uu // 2).astype(mm_dtype)                   # (W, 2W)

    # Free row-pair flattened views: (2H, 2W) <-> (H, 4W) is a contiguous reshape.
    skip_view = down_outputs.reshape(N, C2, H, 4 * W)

    out_view = pl.pallas_call(
        _upsample_concat_kernel,
        out_shape=jax.ShapeDtypeStruct((N, C1 + C2, H, 4 * W), out_dtype),
        grid=(N, n_row_blocks),
        in_specs=[
            pl.BlockSpec((None, C1, TH, W), lambda n, r: (n, 0, r, 0)),
            pl.BlockSpec((None, C2, TH, 4 * W), lambda n, r: (n, 0, r, 0)),
            pl.BlockSpec((W, 2 * W), lambda n, r: (0, 0)),
        ],
        out_specs=pl.BlockSpec((None, C1 + C2, TH, 4 * W),
                               lambda n, r: (n, 0, r, 0)),
        compiler_params=pltpu.CompilerParams(
            dimension_semantics=("parallel", "parallel"),
            vmem_limit_bytes=vmem_limit_bytes,
        ),
    )(inputs, skip_view, dup_w)

    return out_view.reshape(N, C1 + C2, 2 * H, 2 * W)


if __name__ == "__main__":
    key = jax.random.PRNGKey(0)
    k1, k2 = jax.random.split(key)

    # Small shapes consistent with UpSample.forward: decoder features at half
    # resolution, encoder skip at full resolution.
    N, C_in, H, W = 2, 4, 16, 16
    C_skip = 4
    inputs = jax.random.normal(k1, (N, C_in, H, W), jnp.float32)
    down_outputs = jax.random.normal(k2, (N, C_skip, 2 * H, 2 * W), jnp.float32)

    y = upsample_forward(inputs, down_outputs)
    jax.block_until_ready(y)

    # Reference: nn.Upsample(scale_factor=2, mode='nearest') + torch.cat(dim=1).
    ref_up = jnp.repeat(jnp.repeat(inputs, 2, axis=2), 2, axis=3)
    ref = jnp.concatenate([ref_up, down_outputs], axis=1)

    assert y.shape == (N, C_in + C_skip, 2 * H, 2 * W), y.shape
    assert y.dtype == ref.dtype, (y.dtype, ref.dtype)
    max_err = float(jnp.max(jnp.abs(y - ref)))
    assert jnp.allclose(y, ref, rtol=1e-4, atol=1e-5), max_err
    print("KERNEL_OK")
</pallas_src>

<mosaic_0001>
module attributes {stable_mosaic.version = 11 : i64} {
  func.func @_upsample_concat_kernel(%arg0: i32, %arg1: i32, %arg2: memref<1x4x8x16xf32, #tpu.memory_space<vmem>>, %arg3: memref<1x4x8x64xf32, #tpu.memory_space<vmem>>, %arg4: memref<16x32xf32, #tpu.memory_space<vmem>>, %arg5: memref<1x8x8x64xf32, #tpu.memory_space<vmem>>) attributes {dimension_semantics = [#tpu.dimension_semantics<parallel>, #tpu.dimension_semantics<parallel>], iteration_bounds = array<i64: 2, 2>, scalar_prefetch = 0 : i64, scratch_operands = 0 : i64, tpu.core_type = #tpu.core_type<tc>, window_params = [{transform_indices = @transform_0, window_bounds = array<i64: 1, 4, 8, 16>}, {transform_indices = @transform_1, window_bounds = array<i64: 1, 4, 8, 64>}, {pipeline_mode = #tpu.pipeline_mode<synchronous>, transform_indices = @transform_2, window_bounds = array<i64: 16, 32>}, {transform_indices = @transform_3, window_bounds = array<i64: 1, 8, 8, 64>}]} {
    %c0 = arith.constant 0 : index
    %c0_0 = arith.constant 0 : index
    %c0_1 = arith.constant 0 : index
    %c0_2 = arith.constant 0 : index
    %0 = vector.load %arg2[%c0, %c0_0, %c0_1, %c0_2] : memref<1x4x8x16xf32, #tpu.memory_space<vmem>>, vector<1x4x8x16xf32>
    %1 = vector.shape_cast %0 : vector<1x4x8x16xf32> to vector<4x8x16xf32>
    %2 = vector.shape_cast %1 : vector<4x8x16xf32> to vector<32x16xf32>
    %c0_3 = arith.constant 0 : index
    %c0_4 = arith.constant 0 : index
    %3 = vector.load %arg4[%c0_3, %c0_4] : memref<16x32xf32, #tpu.memory_space<vmem>>, vector<16x32xf32>
    %cst = arith.constant dense<0.000000e+00> : vector<32x32xf32>
    %4 = tpu.matmul %2, %3, %cst {dimension_numbers = #tpu.dot_dimension_numbers<[1], [0], [0], [1], [0, 0, 1, 1], [], []>} : vector<32x16xf32>, vector<16x32xf32>, vector<32x32xf32> -> vector<32x32xf32>
    %5 = vector.shape_cast %4 : vector<32x32xf32> to vector<4x8x32xf32>
    %c0_5 = arith.constant 0 : index
    %c0_6 = arith.constant 0 : index
    %c0_7 = arith.constant 0 : index
    %c0_8 = arith.constant 0 : index
    %6 = vector.load %arg5[%c0_5, %c0_6, %c0_7, %c0_8] : memref<1x8x8x64xf32, #tpu.memory_space<vmem>>, vector<1x4x8x32xf32>
    %7 = vector.shape_cast %6 : vector<1x4x8x32xf32> to vector<4x8x32xf32>
    %8 = vector.shape_cast %5 : vector<4x8x32xf32> to vector<1x4x8x32xf32>
    tpu.vector_store %arg5[%c0_5, %c0_6, %c0_7, %c0_8], %8 {strides = array<i32>} : memref<1x8x8x64xf32, #tpu.memory_space<vmem>>, vector<1x4x8x32xf32>,
    %c0_9 = arith.constant 0 : index
    %c0_10 = arith.constant 0 : index
    %c0_11 = arith.constant 0 : index
    %c32 = arith.constant 32 : index
    %9 = vector.load %arg5[%c0_9, %c0_10, %c0_11, %c32] : memref<1x8x8x64xf32, #tpu.memory_space<vmem>>, vector<1x4x8x32xf32>
    %10 = vector.shape_cast %9 : vector<1x4x8x32xf32> to vector<4x8x32xf32>
    %11 = vector.shape_cast %5 : vector<4x8x32xf32> to vector<1x4x8x32xf32>
    tpu.vector_store %arg5[%c0_9, %c0_10, %c0_11, %c32], %11 {strides = array<i32>} : memref<1x8x8x64xf32, #tpu.memory_space<vmem>>, vector<1x4x8x32xf32>,
    %c0_12 = arith.constant 0 : index
    %c0_13 = arith.constant 0 : index
    %c0_14 = arith.constant 0 : index
    %c0_15 = arith.constant 0 : index
    %12 = vector.load %arg3[%c0_12, %c0_13, %c0_14, %c0_15] : memref<1x4x8x64xf32, #tpu.memory_space<vmem>>, vector<1x4x8x64xf32>
    %13 = vector.shape_cast %12 : vector<1x4x8x64xf32> to vector<4x8x64xf32>
    %c0_16 = arith.constant 0 : index
    %c4 = arith.constant 4 : index
    %c0_17 = arith.constant 0 : index
    %c0_18 = arith.constant 0 : index
    %14 = vector.load %arg5[%c0_16, %c4, %c0_17, %c0_18] : memref<1x8x8x64xf32, #tpu.memory_space<vmem>>, vector<1x4x8x64xf32>
    %15 = vector.shape_cast %14 : vector<1x4x8x64xf32> to vector<4x8x64xf32>
    %16 = vector.shape_cast %13 : vector<4x8x64xf32> to vector<1x4x8x64xf32>
    tpu.vector_store %arg5[%c0_16, %c4, %c0_17, %c0_18], %16 {strides = array<i32>} : memref<1x8x8x64xf32, #tpu.memory_space<vmem>>, vector<1x4x8x64xf32>,
    return
  }
  func.func @transform_0(%arg0: i32, %arg1: i32) -> (i32, i32, i32, i32) {
    %c0_i32 = arith.constant 0 : i32
    %c0_i32_0 = arith.constant 0 : i32
    %c0_i32_1 = arith.constant 0 : i32
    return %arg0, %c0_i32, %arg1, %c0_i32_0 : i32, i32, i32, i32
  }
  func.func @transform_1(%arg0: i32, %arg1: i32) -> (i32, i32, i32, i32) {
    %c0_i32 = arith.constant 0 : i32
    %c0_i32_0 = arith.constant 0 : i32
    %c0_i32_1 = arith.constant 0 : i32
    return %arg0, %c0_i32, %arg1, %c0_i32_0 : i32, i32, i32, i32
  }
  func.func @transform_2(%arg0: i32, %arg1: i32) -> (i32, i32) {
    %c0_i32 = arith.constant 0 : i32
    %c0_i32_0 = arith.constant 0 : i32
    %c0_i32_1 = arith.constant 0 : i32
    return %c0_i32, %c0_i32_0 : i32, i32
  }
  func.func @transform_3(%arg0: i32, %arg1: i32) -> (i32, i32, i32, i32) {
    %c0_i32 = arith.constant 0 : i32
    %c0_i32_0 = arith.constant 0 : i32
    %c0_i32_1 = arith.constant 0 : i32
    return %arg0, %c0_i32, %arg1, %c0_i32_0 : i32, i32, i32, i32
  }
}

</mosaic_0001>

<llo_original>
// kernel: tpu_custom_call.1
$region0: #{tpu_custom_call.1}
  #allocation0 [shape = 'u32[]', space=smem, size = 0x4, offset = 0x4, fixed_abs, tag = 'smem constant byte address 0x4 - core index']
  #allocation1 [shape = 'u32[72,128]{1,0:T(1,128)}', space=vmem, size = 0x9000, scoped, tag = 'internal scratch']
  %s0 = inlined_call_operand.hbm [shape: f32[2,4,16,16], index: 0, kind: input, shape index: {}]
  %s1 = inlined_call_operand.hbm [shape: f32[2,4,16,64], index: 1, kind: input, shape index: {}]
  %s2 = inlined_call_operand.hbm [shape: f32[16,32], index: 2, kind: input, shape index: {}]
  %s3 = inlined_call_operand.hbm [shape: f32[2,8,16,64], index: 3, kind: output, shape index: {}]
  %s4 = sld [smem:[#allocation0]]
  $region57: #{tpu_custom_call.1} parent=0
    _
  %s6 = ssub.s32 1, %s4
  %s7 = scalar_select 0, %s6, %s4
  $region1: #{tpu_custom_call.1} parent=0
    #allocation2 [shape = 'u8[32768]{0}', space=vmem, size = 0x8000, scoped, tag = 'input window, operand 0']
    #allocation3 [shape = 's32[2]{0}', space=sflag, size = 0x8, scoped, tag = 'scoped memory for tpu_custom_call.1']
    #allocation4 [shape = 's32[2]{0}', space=sflag, size = 0x8, scoped, tag = 'scoped memory for tpu_custom_call.1']
    #allocation5 [shape = 'u8[32768]{0}', space=vmem, size = 0x8000, scoped, tag = 'input window, operand 1']
    #allocation6 [shape = 's32[2]{0}', space=sflag, size = 0x8, scoped, tag = 'scoped memory for tpu_custom_call.1']
    #allocation7 [shape = 'u8[8192]{0}', space=vmem, size = 0x2000, scoped, tag = 'input window, operand 2, single buffered']
    #allocation8 [shape = 'u8[65536]{0}', space=vmem, size = 0x10000, scoped, tag = 'output window, operand 0']
    %8 = vsyncpa [#allocation3], 0
    %s9 = scalar_lea.sflag [#allocation3], 1
    %10 = vsyncpa %s9, 0
    %11 = vsyncpa [#allocation6], 0
    %s12 = scalar_lea.sflag [#allocation6], 1
    %13 = vsyncpa %s12, 0
    %14 = vsyncpa [#allocation4], 0
    %s15 = scalar_lea.sflag [#allocation4], 1
    %16 = vsyncpa %s15, 0
    loop: start=0, step=1, limit=6
    $region2: #{tpu_custom_call.1} parent=1 // loop_pre_header
      _
    $region3: #{tpu_custom_call.1} parent=1 // loop_header
      %s18 = sphi 0, %s22
      %p19 = scmp.ge.s32.totalorder %s18, 6
      %s25 = sphi 0, %s37
      %s26 = sphi 0, %s33
      %s27 = sphi 0, %s25
      %s28 = sphi 0, %s26
      %s29 = sphi 0, %s27
      %s30 = sphi 0, %s28
      %s42 = sphi 0, %s44
      %s45 = sphi 0, %s42
      %s46 = sphi 0, %s45
      %s62 = sphi 0, %s46
      %s70 = sphi 0, %s72
      %s73 = sphi 0, %s70
      %s74 = sphi 0, %s73
      %s90 = sphi 0, %s74
      %s94 = sphi 0, %s94
      %s96 = sphi 0, %s94
      %s97 = sphi 0, %s96
      %s111 = sphi 0, %s97
      %s119 = sphi 0, %s121
      %s122 = sphi 0, %s119
      %s123 = sphi 0, %s122
      %s139 = sphi 0, %s123
    $region4: #{tpu_custom_call.1} parent=1 // loop_header_branch
      %21 = sbr.rel (%p19) target = $region8
    $region5: #{tpu_custom_call.1} parent=1 // loop_body
      %s23 = ssub.s32 %s18, 1
      %s24 = ssub.s32 %s18, 2
      %s31 = sadd.s32 1, %s26
      %p32 = scmp.ge.s32.totalorder %s31, 2
      %s33 = scalar_select %p32, 0, %s31
      %s34 = sadd.s32 1, %s25
      %s35 = scalar_select %p32, %s34, %s25
      %p36 = scmp.ge.s32.totalorder %s35, 2
      %s37 = scalar_select %p36, 0, %s35
      %s38 = ssub.s32 %s25, %s37
      %s39 = ssub.s32 %s26, %s33
      %s40 = sor.u32 %s38, %s39
      %p41 = scmp.eq.s32.totalorder %s40, 0
      %s43 = sadd.s32 %s42, 1
      %s44 = scalar_select %p41, %s42, %s43
      %p47 = pneg %p41
      %p48 = scmp.eq.s32.totalorder %s18, 3
      %p49 = por %p47, %p48
      %p50 = scmp.ne.s32.totalorder %s42, %s45
      %p51 = scmp.eq.s32.totalorder %s18, 0
      %p52 = por %p50, %p51
      %p53 = scmp.ne.s32.totalorder %s42, %s45
      %p54 = scmp.eq.s32.totalorder %s23, 3
      %p55 = por %p53, %p54
      %p56 = scmp.ne.s32.totalorder %s45, %s46
      %p57 = scmp.eq.s32.totalorder %s23, 0
      %p58 = por %p56, %p57
      %p59 = scmp.ne.s32.totalorder %s45, %s46
      %p60 = scmp.eq.s32.totalorder %s24, 3
      %p61 = por %p59, %p60
      %p63 = scmp.ne.s32.totalorder %s46, %s62
      %p64 = scmp.eq.s32.totalorder %s24, 0
      %p65 = por %p63, %p64
      %s66 = ssub.s32 %s25, %s37
      %s67 = ssub.s32 %s26, %s33
      %s68 = sor.u32 %s66, %s67
      %p69 = scmp.eq.s32.totalorder %s68, 0
      %s71 = sadd.s32 %s70, 1
      %s72 = scalar_select %p69, %s70, %s71
      %p75 = pneg %p69
      %p76 = scmp.eq.s32.totalorder %s18, 3
      %p77 = por %p75, %p76
      %p78 = scmp.ne.s32.totalorder %s70, %s73
      %p79 = scmp.eq.s32.totalorder %s18, 0
      %p80 = por %p78, %p79
      %p81 = scmp.ne.s32.totalorder %s70, %s73
      %p82 = scmp.eq.s32.totalorder %s23, 3
      %p83 = por %p81, %p82
      %p84 = scmp.ne.s32.totalorder %s73, %s74
      %p85 = scmp.eq.s32.totalorder %s23, 0
      %p86 = por %p84, %p85
      %p87 = scmp.ne.s32.totalorder %s73, %s74
      %p88 = scmp.eq.s32.totalorder %s24, 3
      %p89 = por %p87, %p88
      %p91 = scmp.ne.s32.totalorder %s74, %s90
      %p92 = scmp.eq.s32.totalorder %s24, 0
      %p93 = por %p91, %p92
      %s95 = sadd.s32 %s94, 1
      %p98 = scmp.eq.s32.totalorder %s18, 3
      %p99 = scmp.ne.s32.totalorder %s94, %s96
      %p100 = scmp.eq.s32.totalorder %s18, 0
      %p101 = por %p99, %p100
      %p102 = scmp.ne.s32.totalorder %s94, %s96
      %p103 = scmp.eq.s32.totalorder %s23, 3
      %p104 = por %p102, %p103
      %p105 = scmp.ne.s32.totalorder %s96, %s97
      %p106 = scmp.eq.s32.totalorder %s23, 0
      %p107 = por %p105, %p106
      %p108 = scmp.ne.s32.totalorder %s96, %s97
      %p109 = scmp.eq.s32.totalorder %s24, 3
      %p110 = por %p108, %p109
      %p112 = scmp.ne.s32.totalorder %s97, %s111
      %p113 = scmp.eq.s32.totalorder %s24, 0
      %p114 = por %p112, %p113
      %s115 = ssub.s32 %s25, %s37
      %s116 = ssub.s32 %s26, %s33
      %s117 = sor.u32 %s115, %s116
      %p118 = scmp.eq.s32.totalorder %s117, 0
      %s120 = sadd.s32 %s119, 1
      %s121 = scalar_select %p118, %s119, %s120
      %p124 = pneg %p118
      %p125 = scmp.eq.s32.totalorder %s18, 3
      %p126 = por %p124, %p125
      %p127 = scmp.ne.s32.totalorder %s119, %s122
      %p128 = scmp.eq.s32.totalorder %s18, 0
      %p129 = por %p127, %p128
      %p130 = scmp.ne.s32.totalorder %s119, %s122
      %p131 = scmp.eq.s32.totalorder %s23, 3
      %p132 = por %p130, %p131
      %p133 = scmp.ne.s32.totalorder %s122, %s123
      %p134 = scmp.eq.s32.totalorder %s23, 0
      %p135 = por %p133, %p134
      %p136 = scmp.ne.s32.totalorder %s122, %s123
      %p137 = scmp.eq.s32.totalorder %s24, 3
      %p138 = por %p136, %p137
      %p140 = scmp.ne.s32.totalorder %s123, %s139
      %p141 = scmp.eq.s32.totalorder %s24, 0
      %p142 = por %p140, %p141
      %p143 = scmp.le.s32.totalorder 1, %s18
      %p144 = scmp.lt.s32.totalorder %s18, 5
      %p145 = pnand %p143, %p144
      %p146 = pneg %p145
      // Predicated region
      $region9: #{tpu_custom_call.1} parent=5 // pred_check
        _
      $region10: #{tpu_custom_call.1} parent=5 // pred_check_branch
        %148 = sbr.rel (%p145) target = $region12
      $region11: #{tpu_custom_call.1} parent=5 // pred_region
        %s149 = ssub.s32 %s18, 1
        // Predicated region
        $region13: #{tpu_custom_call.1} parent=11 // pred_check
          %p150 = pneg %p107
        $region14: #{tpu_custom_call.1} parent=11 // pred_check_branch
          %152 = sbr.rel (%p150) target = $region16
        $region15: #{tpu_custom_call.1} parent=11 // pred_region
          %154 = vsyncadd [#allocation6], 0
          %s155 = sshll.u32 %s2, 4
          %s156 = int_to_ptr.hbm [resolvable:$true] %s155
          %s157 = sshll.u32 [#allocation7], 4
          %s158 = int_to_ptr.vmem [resolvable:$true] %s157
          %163 = dma.hbm_to_vmem [thread:$0]  %s156, 256, %s158, [#allocation6], 128, 128, 8
        $region16: #{tpu_custom_call.1} parent=11 // pred_fallthru
          _
      $region12: #{tpu_custom_call.1} parent=5 // pred_fallthru
        _
      %p164 = scmp.lt.s32.totalorder %s18, 4
      // Predicated region
      $region17: #{tpu_custom_call.1} parent=5 // pred_check
        %p165 = pneg %p164
      $region18: #{tpu_custom_call.1} parent=5 // pred_check_branch
        %167 = sbr.rel (%p165) target = $region20
      $region19: #{tpu_custom_call.1} parent=5 // pred_region
        // Predicated region
        $region21: #{tpu_custom_call.1} parent=19 // pred_check
          %p168 = pneg %p52
        $region22: #{tpu_custom_call.1} parent=19 // pred_check_branch
          %170 = sbr.rel (%p168) target = $region24
        $region23: #{tpu_custom_call.1} parent=19 // pred_region
          %s171 = sand.u32 %s42, 1
          %s172 = scalar_lea.sflag [#allocation3], %s171
          %s173 = sand.u32 %s42, 1
          %s174 = smul.addr %s173, 32
          %s175 = scalar_lea.vmem [#allocation2], %s174
          %177 = vsyncadd %s172, 0
          %s178 = smul.addr %s25, 8
          %s179 = sadd.s32 %s26, %s178
          %s180 = smul.addr %s179, 8
          %s181 = scalar_lea.hbm %s0, %s180
          %s182 = sshll.u32 %s181, 4
          %s183 = int_to_ptr.hbm [resolvable:$true] %s182
          %s184 = sshll.u32 %s175, 4
          %s185 = int_to_ptr.vmem [resolvable:$true] %s184
          %190 = dma.hbm_to_vmem [thread:$0]  %s183, 512, %s185, %s172, 256, 128, 8
        $region24: #{tpu_custom_call.1} parent=19 // pred_fallthru
          _
        // Predicated region
        $region25: #{tpu_custom_call.1} parent=19 // pred_check
          %p191 = pneg %p80
        $region26: #{tpu_custom_call.1} parent=19 // pred_check_branch
          %193 = sbr.rel (%p191) target = $region28
        $region27: #{tpu_custom_call.1} parent=19 // pred_region
          %s194 = sand.u32 %s18, 1
          %s195 = scalar_lea.sflag [#allocation6], %s194
          %s196 = sand.u32 %s70, 1
          %s197 = smul.addr %s196, 32
          %s198 = scalar_lea.vmem [#allocation5], %s197
          %200 = vsyncadd %s195, 0
          %s201 = smul.addr %s25, 8
          %s202 = sadd.s32 %s26, %s201
          %s203 = smul.addr %s202, 8
          %s204 = scalar_lea.hbm %s1, %s203
          %s205 = sshll.u32 %s204, 4
          %s206 = int_to_ptr.hbm [resolvable:$true] %s205
          %s207 = sshll.u32 %s198, 4
          %s208 = int_to_ptr.vmem [resolvable:$true] %s207
          %213 = dma.hbm_to_vmem [thread:$0]  %s206, 512, %s208, %s195, 256, 128, 8
        $region28: #{tpu_custom_call.1} parent=19 // pred_fallthru
          _
      $region20: #{tpu_custom_call.1} parent=5 // pred_fallthru
        _
      %p214 = scmp.le.s32.totalorder 1, %s18
      %p215 = scmp.lt.s32.totalorder %s18, 5
      %p216 = pnand %p214, %p215
      %p217 = pneg %p216
      // Predicated region
      $region29: #{tpu_custom_call.1} parent=5 // pred_check
        _
      $region30: #{tpu_custom_call.1} parent=5 // pred_check_branch
        %219 = sbr.rel (%p216) target = $region32
      $region31: #{tpu_custom_call.1} parent=5 // pred_region
        %s220 = ssub.s32 %s18, 1
        %s221 = sand.u32 %s45, 1
        %s222 = scalar_lea.sflag [#allocation3], %s221
        %s223 = sand.u32 %s45, 1
        %s224 = smul.addr %s223, 32
        %s225 = scalar_lea.vmem [#allocation2], %s224
        // Predicated region
        $region33: #{tpu_custom_call.1} parent=31 // pred_check
          %p226 = pneg %p58
        $region34: #{tpu_custom_call.1} parent=31 // pred_check_branch
          %228 = sbr.rel (%p226) target = $region36
        $region35: #{tpu_custom_call.1} parent=31 // pred_region
          %230 = dma.done %s222, 512
        $region36: #{tpu_custom_call.1} parent=31 // pred_fallthru
          _
        %s231 = sand.u32 %s23, 1
        %s232 = scalar_lea.sflag [#allocation6], %s231
        %s233 = sand.u32 %s73, 1
        %s234 = smul.addr %s233, 32
        %s235 = scalar_lea.vmem [#allocation5], %s234
        // Predicated region
        $region37: #{tpu_custom_call.1} parent=31 // pred_check
          %p236 = pneg %p86
        $region38: #{tpu_custom_call.1} parent=31 // pred_check_branch
          %238 = sbr.rel (%p236) target = $region40
        $region39: #{tpu_custom_call.1} parent=31 // pred_region
          %240 = dma.done %s232, 512
        $region40: #{tpu_custom_call.1} parent=31 // pred_fallthru
          _
        // Predicated region
        $region41: #{tpu_custom_call.1} parent=31 // pred_check
          %p241 = pneg %p107
        $region42: #{tpu_custom_call.1} parent=31 // pred_check_branch
          %243 = sbr.rel (%p241) target = $region44
        $region43: #{tpu_custom_call.1} parent=31 // pred_region
          %245 = dma.done [#allocation6], 256
        $region44: #{tpu_custom_call.1} parent=31 // pred_fallthru
          _
        %s246 = sand.u32 %s45, 1
        %s247 = scalar_lea.sflag [#allocation3], %s246
        %s248 = sand.u32 %s45, 1
        %s249 = smul.addr %s248, 32
        %s250 = scalar_lea.vmem [#allocation2], %s249
        %p251 = pneg %p58
        %p252 = pneg %p55
        %s253 = sand.u32 %s23, 1
        %s254 = scalar_lea.sflag [#allocation6], %s253
        %s255 = sand.u32 %s73, 1
        %s256 = smul.addr %s255, 32
        %s257 = scalar_lea.vmem [#allocation5], %s256
        %p258 = pneg %p86
        %p259 = pneg %p83
        %p260 = pneg %p107
        %p261 = pneg %p104
        %p262 = pneg %p135
        %p263 = pneg %p132
        %s264 = sand.u32 %s122, 1
        %s265 = scalar_lea.sflag [#allocation4], %s264
        %s266 = sand.u32 %s122, 1
        %s267 = smul.addr %s266, 64
        %s268 = scalar_lea.vmem [#allocation8], %s267
        %v269 = vld [vmem:[%s225] sm:$0xff]
        %v270 = vld [vmem:[%s225 + $0x8] sm:$0xff]
        %v271 = vld [vmem:[%s225 + $0x10] sm:$0xff]
        %v272 = vld [vmem:[%s225 + $0x18] sm:$0xff]
        %v273 = vld [vmem:[#allocation7] sm:$0xff]
        %v274 = vld [vmem:[#allocation7 + $0x8] sm:$0xff]
        %vm275 = vcmask 130048
        %v277 = vsel %vm275, %v269, 0
        %v280 = vsel %vm275, %v270, 0
        %v283 = vsel %vm275, %v271, 0
        %v286 = vsel %vm275, %v272, 0
        %288 = vmatpush.msra.mxu0 0.0
        %289 = vmatpush.msra.mxu0 0.0
        %290 = vmatpush.msra.mxu0 0.0
        %291 = vmatpush.msra.mxu0 0.0
        %292 = vmatpush.msra.mxu0 0.0
        %293 = vmatpush.msra.mxu0 0.0
        %294 = vmatpush.msra.mxu0 0.0
        %295 = vmatpush.msra.mxu0 0.0
        %296 = vmatpush.msra.mxu0 0.0
        %297 = vmatpush.msra.mxu0 0.0
        %298 = vmatpush.msra.mxu0 0.0
        %299 = vmatpush.msra.mxu0 0.0
        %300 = vmatpush.msra.mxu0 0.0
        %301 = vmatpush.msra.mxu0 0.0
        %302 = vmatpush.msra.mxu0 %v274
        %303 = vmatpush.msra.mxu0 %v273
        %304 = vmatmul.f32.gmra.mxu0 %v277
        %v305 = vpop.f32.mrf.mxu0
        %v306 = vadd.f32 0.0, %v305
        %307 = vmatmul.f32.gmra.mxu0 %v280
        %v308 = vpop.f32.mrf.mxu0
        %v309 = vadd.f32 0.0, %v308
        %310 = vmatmul.f32.gmra.mxu0 %v283
        %v311 = vpop.f32.mrf.mxu0
        %v312 = vadd.f32 0.0, %v311
        %313 = vmatmul.f32.gmra.mxu0 %v286
        %v314 = vpop.f32.mrf.mxu0
        %v315 = vadd.f32 0.0, %v314
        %316 = vdwg.mxu0
        %vm317 = vcmask 261120
        %318 = vst.msk [vmem:[%s268] sm:$0xff] %vm317, %v306
        %319 = vst.msk [vmem:[%s268 + $0x8] sm:$0xff] %vm317, %v309
        %320 = vst.msk [vmem:[%s268 + $0x10] sm:$0xff] %vm317, %v312
        %321 = vst.msk [vmem:[%s268 + $0x18] sm:$0xff] %vm317, %v315
        %326 = vrot.lane.b32.xlu0 %v306, 32
        %v327 = vpop.permute.xlu0 %326
        %328 = vrot.lane.b32.xlu0 %v309, 32
        %v329 = vpop.permute.xlu0 %328
        %330 = vrot.lane.b32.xlu0 %v312, 32
        %v331 = vpop.permute.xlu0 %330
        %332 = vrot.lane.b32.xlu0 %v315, 32
        %v333 = vpop.permute.xlu0 %332
        %vm338 = vcmask 523520
        %339 = vst.msk [vmem:[%s268] sm:$0xff] %vm338, %v327
        %340 = vst.msk [vmem:[%s268 + $0x8] sm:$0xff] %vm338, %v329
        %341 = vst.msk [vmem:[%s268 + $0x10] sm:$0xff] %vm338, %v331
        %342 = vst.msk [vmem:[%s268 + $0x18] sm:$0xff] %vm338, %v333
        %v343 = vld [vmem:[%s235] sm:$0xff]
        %v344 = vld [vmem:[%s235 + $0x8] sm:$0xff]
        %v345 = vld [vmem:[%s235 + $0x10] sm:$0xff]
        %v346 = vld [vmem:[%s235 + $0x18] sm:$0xff]
        %s347 = scalar_lea.vmem %s268, 32 [#allocation8]
        %vm348 = vcmask 523264
        %349 = vst.msk [vmem:[%s347] sm:$0xff] %vm348, %v343
        %350 = vst.msk [vmem:[%s347 + $0x8] sm:$0xff] %vm348, %v344
        %351 = vst.msk [vmem:[%s347 + $0x10] sm:$0xff] %vm348, %v345
        %352 = vst.msk [vmem:[%s347 + $0x18] sm:$0xff] %vm348, %v346
        %s353 = sand.u32 %s122, 1
        %s354 = scalar_lea.sflag [#allocation4], %s353
        %s355 = sand.u32 %s122, 1
        %s356 = smul.addr %s355, 64
        %s357 = scalar_lea.vmem [#allocation8], %s356
        // Predicated region
        $region45: #{tpu_custom_call.1} parent=31 // pred_check
          %p358 = pneg %p132
        $region46: #{tpu_custom_call.1} parent=31 // pred_check_branch
          %360 = sbr.rel (%p358) target = $region48
        $region47: #{tpu_custom_call.1} parent=31 // pred_region
          %362 = vsyncadd %s354, 0
          %s363 = smul.addr %s27, 16
          %s364 = sadd.s32 %s28, %s363
          %s365 = smul.addr %s364, 8
          %s366 = scalar_lea.hbm %s3, %s365
          %s367 = sshll.u32 %s357, 4
          %s368 = int_to_ptr.vmem [resolvable:$true] %s367
          %s369 = sshll.u32 %s366, 4
          %s370 = int_to_ptr.hbm [resolvable:$true] %s369
          %375 = dma.vmem_to_hbm [thread:$0]  %s368, 1024, %s370, %s354, 128, 256, 8
        $region48: #{tpu_custom_call.1} parent=31 // pred_fallthru
          _
      $region32: #{tpu_custom_call.1} parent=5 // pred_fallthru
        _
      %p376 = scmp.le.s32.totalorder 2, %s18
      // Predicated region
      $region49: #{tpu_custom_call.1} parent=5 // pred_check
        %p377 = pneg %p376
      $region50: #{tpu_custom_call.1} parent=5 // pred_check_branch
        %379 = sbr.rel (%p377) target = $region52
      $region51: #{tpu_custom_call.1} parent=5 // pred_region
        %s380 = ssub.s32 %s18, 2
        // Predicated region
        $region53: #{tpu_custom_call.1} parent=51 // pred_check
          %p381 = pneg %p138
        $region54: #{tpu_custom_call.1} parent=51 // pred_check_branch
          %383 = sbr.rel (%p381) target = $region56
        $region55: #{tpu_custom_call.1} parent=51 // pred_region
          %s384 = sand.u32 %s123, 1
          %s385 = scalar_lea.sflag [#allocation4], %s384
          %s386 = sand.u32 %s123, 1
          %s387 = smul.addr %s386, 64
          %s388 = scalar_lea.vmem [#allocation8], %s387
          %390 = dma.done %s385, 1024
        $region56: #{tpu_custom_call.1} parent=51 // pred_fallthru
          _
      $region52: #{tpu_custom_call.1} parent=5 // pred_fallthru
        _
    $region6: #{tpu_custom_call.1} parent=1 // loop_footer
      %s22 = sadd.s32 1, %s18
    $region7: #{tpu_custom_call.1} parent=1 // loop_footer_branch
      %17 = sbr.rel target = $region3
    $region8: #{tpu_custom_call.1} parent=1 // loop_exit
      _
    %391 = vsyncpa [#allocation3], 1
    %s392 = scalar_lea.sflag [#allocation3], 1
    %393 = vsyncpa %s392, 1
    %394 = vsyncpa [#allocation6], 1
    %s395 = scalar_lea.sflag [#allocation6], 1
    %396 = vsyncpa %s395, 1
    %397 = vsyncpa [#allocation4], 1
    %s398 = scalar_lea.sflag [#allocation4], 1
    %399 = vsyncpa %s398, 1

</llo_original>
